<compile_context>
chip_gen: v6e
topology: v6e:2x2x1
jax: 0.10.0
libtpu: 0.0.40
codegen_flags: <defaults>
</compile_context>

<pallas_src>
import jax
import jax.numpy as jnp
from jax.experimental import pallas as pl
from jax.experimental.pallas import tpu as pltpu

_MAX_INFLIGHT_DMAS = 16        # bound on outstanding HBM->HBM descriptors
_SMALL_CHUNK_BYTES = 512       # below this per-row chunk size, stage via VMEM
_VMEM_BUDGET_BYTES = 8 << 20   # headroom well under v7x's 64 MiB VMEM


def _concat_dma_kernel(*refs):
    """refs = (*in_hbm_refs, out_hbm_ref, dma_sems).

    One HBM->HBM async copy per input into its static slice of the flattened
    output; copies overlap (bounded window), then all are waited on.
    """
    *in_refs, out_ref, sems = refs
    copies = []
    off = 0
    for i, r in enumerate(in_refs):
        sz = r.shape[1]  # C_i * H * W (static Python int)
        cp = pltpu.make_async_copy(r, out_ref.at[:, off:off + sz], sems.at[i])
        if i >= _MAX_INFLIGHT_DMAS:
            # Rolling window: retire the oldest before issuing a new one so we
            # never exhaust the per-core outstanding-DMA queue.
            copies[i - _MAX_INFLIGHT_DMAS].wait()
        cp.start()
        copies.append(cp)
        off += sz
    for cp in copies[max(0, len(copies) - _MAX_INFLIGHT_DMAS):]:
        cp.wait()


def _concat_vmem_kernel(*refs):
    """refs = (*in_vmem_tiles, out_vmem_tile).

    Small-chunk path: gather all inputs for a block of batch rows into one
    VMEM output tile; Pallas writes it back as a single contiguous HBM slab.
    """
    *in_refs, out_ref = refs
    off = 0
    for r in in_refs:
        sz = r.shape[-1]
        out_ref[:, off:off + sz] = r[...]
        off += sz


def _choose_row_block(n, bytes_per_row):
    """Rows per VMEM tile; in+out, double-buffered, stays under the budget."""
    tm = max(1, _VMEM_BUDGET_BYTES // max(4 * bytes_per_row, 1))
    if tm >= n:
        return n                       # full batch dim: always layout-legal
    return max(8, (tm // 8) * 8)       # partial blocks need a multiple of 8


def concat_block(x_list, *, min_pallas_bytes=2 << 20):
    """Pallas equivalent of ConcatBlock.forward: concat along channel dim (dim=1)."""
    # Fast path: torch.cat of a single tensor is the identity.
    if len(x_list) == 1:
        return x_list[0]

    shapes = [tuple(x.shape) for x in x_list]
    dtype = x_list[0].dtype
    assert all(x.dtype == dtype for x in x_list), "all inputs must share a dtype"

    n = shapes[0][0]
    spatial = shapes[0][2:]
    for s in shapes:
        assert s[0] == n and s[2:] == spatial, "non-channel dims must match"
    c_list = [s[1] for s in shapes]
    c_total = sum(c_list)

    inner = 1
    for d in spatial:
        inner *= d

    itemsize = jnp.dtype(dtype).itemsize
    total_bytes = n * c_total * inner * itemsize

    # Zero-channel inputs contribute nothing; drop them before the kernel.
    nz = [(x, c) for x, c in zip(x_list, c_list) if c > 0]

    # Small-concat cutoff: launch + DMA-setup overhead dominates the sub-µs
    # data movement, and native HLO concatenate can fuse into its neighbours.
    # (Also covers degenerate n == 0 / c_total == 0 cases.)
    if total_bytes < min_pallas_bytes or not nz or n == 0:
        return jnp.concatenate(x_list, axis=1)

    # Lane-dense 2-D views: (N, C_i*H*W). Free reshapes for row-major NCHW, so
    # the channel concat becomes a concat along the flattened last dim.
    flat_inputs = [x.reshape(n, c * inner) for x, c in nz]
    out_row = c_total * inner

    cost = pl.CostEstimate(flops=0, transcendentals=0,
                           bytes_accessed=2 * total_bytes)

    min_chunk_bytes = min(c * inner for _, c in nz) * itemsize
    if min_chunk_bytes < _SMALL_CHUNK_BYTES:
        # Strided HBM->HBM writes with sub-512 B contiguous chunks are far
        # below peak DMA efficiency; stage a block of batch rows through VMEM
        # and write one contiguous (tm, C_total*inner) slab per block.
        tm = _choose_row_block(n, 2 * out_row * itemsize)
        out_flat = pl.pallas_call(
            _concat_vmem_kernel,
            out_shape=jax.ShapeDtypeStruct((n, out_row), dtype),
            grid=(pl.cdiv(n, tm),),
            in_specs=[pl.BlockSpec((tm, xf.shape[1]), lambda i: (i, 0))
                      for xf in flat_inputs],
            out_specs=pl.BlockSpec((tm, out_row), lambda i: (i, 0)),
            compiler_params=pltpu.CompilerParams(
                dimension_semantics=("parallel",)),
            cost_estimate=cost,
        )(*flat_inputs)
    else:
        # Main path: zero-VMEM, one concurrent HBM->HBM DMA per input.
        out_flat = pl.pallas_call(
            _concat_dma_kernel,
            out_shape=jax.ShapeDtypeStruct((n, out_row), dtype),
            in_specs=[pl.BlockSpec(memory_space=pl.ANY) for _ in flat_inputs],
            out_specs=pl.BlockSpec(memory_space=pl.ANY),
            scratch_shapes=[pltpu.SemaphoreType.DMA((len(flat_inputs),))],
            cost_estimate=cost,
        )(*flat_inputs)

    return out_flat.reshape((n, c_total) + spatial)


if __name__ == "__main__":
    # ConcatBlock has no parameters (in_channels is unused in forward).
    key = jax.random.PRNGKey(0)
    k1, k2, k3 = jax.random.split(key, 3)

    # Small NCHW inputs: batch=2, spatial=16x16, channels 4 / 3 / 5.
    x0 = jax.random.normal(k1, (2, 4, 16, 16), dtype=jnp.float32)
    x1 = jax.random.normal(k2, (2, 3, 16, 16), dtype=jnp.float32)
    x2 = jax.random.normal(k3, (2, 5, 16, 16), dtype=jnp.float32)
    ref = jnp.concatenate([x0, x1, x2], axis=1)

    # 1) Default heuristics: this ~24 KiB case takes the jnp.concatenate fallback.
    out_default = jax.block_until_ready(concat_block([x0, x1, x2]))
    assert out_default.shape == (2, 12, 16, 16), out_default.shape
    assert out_default.dtype == jnp.float32
    assert jnp.array_equal(out_default, ref), "fallback path mismatch"

    # 2) Force the HBM->HBM DMA kernel path (per-row chunks are 3-5 KiB).
    out_dma = jax.block_until_ready(concat_block([x0, x1, x2], min_pallas_bytes=0))
    assert jnp.array_equal(out_dma, ref), "DMA-concat kernel mismatch"

    # 3) Force the small-chunk VMEM-staged kernel path (1x1 spatial, tiny C_i).
    ka, kb, kc = jax.random.split(jax.random.PRNGKey(1), 3)
    y0 = jax.random.normal(ka, (16, 3, 1, 1), dtype=jnp.float32)
    y1 = jax.random.normal(kb, (16, 5, 1, 1), dtype=jnp.float32)
    y2 = jax.random.normal(kc, (16, 2, 1, 1), dtype=jnp.float32)
    ref_small = jnp.concatenate([y0, y1, y2], axis=1)
    out_vmem = jax.block_until_ready(concat_block([y0, y1, y2], min_pallas_bytes=0))
    assert out_vmem.shape == (16, 10, 1, 1), out_vmem.shape
    assert jnp.array_equal(out_vmem, ref_small), "VMEM-concat kernel mismatch"

    # 4) Single-input fast path.
    out_one = jax.block_until_ready(concat_block([x0]))
    assert jnp.array_equal(out_one, x0), "single-input fast path mismatch"

    print("KERNEL_OK")
</pallas_src>

<mosaic_0001>
module attributes {stable_mosaic.version = 11 : i64} {
  func.func @_concat_dma_kernel(%arg0: memref<2x1024xf32, #tpu.memory_space<any>>, %arg1: memref<2x768xf32, #tpu.memory_space<any>>, %arg2: memref<2x1280xf32, #tpu.memory_space<any>>, %arg3: memref<2x3072xf32, #tpu.memory_space<any>>, %arg4: memref<3x!tpu.dma_semaphore, #tpu.memory_space<semaphore_mem>>) attributes {dimension_semantics = [], scalar_prefetch = 0 : i64, scratch_operands = 1 : i64, tpu.core_type = #tpu.core_type<tc>} {
    %c0_i32 = arith.constant 0 : i32
    %c0_i32_0 = arith.constant 0 : i32
    %c0_i32_1 = arith.constant 0 : i32
    %0 = tpu.memref_slice %arg3[%c0_i32_0, %c0_i32_1] : memref<2x3072xf32, #tpu.memory_space<any>> -> memref<2x1024xf32, #tpu.memory_space<any>>
    %1 = tpu.memref_slice %arg4[%c0_i32] : memref<3x!tpu.dma_semaphore, #tpu.memory_space<semaphore_mem>> -> memref<1x!tpu.dma_semaphore, #tpu.memory_space<semaphore_mem>>
    %2 = tpu.memref_squeeze %1 : memref<1x!tpu.dma_semaphore, #tpu.memory_space<semaphore_mem>> -> memref<!tpu.dma_semaphore, #tpu.memory_space<semaphore_mem>>
    tpu.enqueue_dma source(%arg0 : memref<2x1024xf32, #tpu.memory_space<any>>) target(%0 : memref<2x1024xf32, #tpu.memory_space<any>>) target_semaphore(%2 : memref<!tpu.dma_semaphore, #tpu.memory_space<semaphore_mem>>)
    %c1_i32 = arith.constant 1 : i32
    %c0_i32_2 = arith.constant 0 : i32
    %c1024_i32 = arith.constant 1024 : i32
    %3 = tpu.memref_slice %arg3[%c0_i32_2, %c1024_i32] : memref<2x3072xf32, #tpu.memory_space<any>> -> memref<2x768xf32, #tpu.memory_space<any>>
    %4 = tpu.memref_slice %arg4[%c1_i32] : memref<3x!tpu.dma_semaphore, #tpu.memory_space<semaphore_mem>> -> memref<1x!tpu.dma_semaphore, #tpu.memory_space<semaphore_mem>>
    %5 = tpu.memref_squeeze %4 : memref<1x!tpu.dma_semaphore, #tpu.memory_space<semaphore_mem>> -> memref<!tpu.dma_semaphore, #tpu.memory_space<semaphore_mem>>
    tpu.enqueue_dma source(%arg1 : memref<2x768xf32, #tpu.memory_space<any>>) target(%3 : memref<2x768xf32, #tpu.memory_space<any>>) target_semaphore(%5 : memref<!tpu.dma_semaphore, #tpu.memory_space<semaphore_mem>>)
    %c2_i32 = arith.constant 2 : i32
    %c0_i32_3 = arith.constant 0 : i32
    %c1792_i32 = arith.constant 1792 : i32
    %6 = tpu.memref_slice %arg3[%c0_i32_3, %c1792_i32] : memref<2x3072xf32, #tpu.memory_space<any>> -> memref<2x1280xf32, #tpu.memory_space<any>>
    %7 = tpu.memref_slice %arg4[%c2_i32] : memref<3x!tpu.dma_semaphore, #tpu.memory_space<semaphore_mem>> -> memref<1x!tpu.dma_semaphore, #tpu.memory_space<semaphore_mem>>
    %8 = tpu.memref_squeeze %7 : memref<1x!tpu.dma_semaphore, #tpu.memory_space<semaphore_mem>> -> memref<!tpu.dma_semaphore, #tpu.memory_space<semaphore_mem>>
    tpu.enqueue_dma source(%arg2 : memref<2x1280xf32, #tpu.memory_space<any>>) target(%6 : memref<2x1280xf32, #tpu.memory_space<any>>) target_semaphore(%8 : memref<!tpu.dma_semaphore, #tpu.memory_space<semaphore_mem>>)
    %c0_i32_4 = arith.constant 0 : i32
    %c0_i32_5 = arith.constant 0 : i32
    %c0_i32_6 = arith.constant 0 : i32
    %9 = tpu.memref_slice %arg3[%c0_i32_5, %c0_i32_6] : memref<2x3072xf32, #tpu.memory_space<any>> -> memref<2x1024xf32, #tpu.memory_space<any>>
    %10 = tpu.memref_slice %arg4[%c0_i32_4] : memref<3x!tpu.dma_semaphore, #tpu.memory_space<semaphore_mem>> -> memref<1x!tpu.dma_semaphore, #tpu.memory_space<semaphore_mem>>
    %11 = tpu.memref_squeeze %10 : memref<1x!tpu.dma_semaphore, #tpu.memory_space<semaphore_mem>> -> memref<!tpu.dma_semaphore, #tpu.memory_space<semaphore_mem>>
    tpu.wait_dma2 semaphore(%11 : memref<!tpu.dma_semaphore, #tpu.memory_space<semaphore_mem>>) src(%arg0 : memref<2x1024xf32, #tpu.memory_space<any>>) dst(%9 : memref<2x1024xf32, #tpu.memory_space<any>>)
    %c1_i32_7 = arith.constant 1 : i32
    %c0_i32_8 = arith.constant 0 : i32
    %c1024_i32_9 = arith.constant 1024 : i32
    %12 = tpu.memref_slice %arg3[%c0_i32_8, %c1024_i32_9] : memref<2x3072xf32, #tpu.memory_space<any>> -> memref<2x768xf32, #tpu.memory_space<any>>
    %13 = tpu.memref_slice %arg4[%c1_i32_7] : memref<3x!tpu.dma_semaphore, #tpu.memory_space<semaphore_mem>> -> memref<1x!tpu.dma_semaphore, #tpu.memory_space<semaphore_mem>>
    %14 = tpu.memref_squeeze %13 : memref<1x!tpu.dma_semaphore, #tpu.memory_space<semaphore_mem>> -> memref<!tpu.dma_semaphore, #tpu.memory_space<semaphore_mem>>
    tpu.wait_dma2 semaphore(%14 : memref<!tpu.dma_semaphore, #tpu.memory_space<semaphore_mem>>) src(%arg1 : memref<2x768xf32, #tpu.memory_space<any>>) dst(%12 : memref<2x768xf32, #tpu.memory_space<any>>)
    %c2_i32_10 = arith.constant 2 : i32
    %c0_i32_11 = arith.constant 0 : i32
    %c1792_i32_12 = arith.constant 1792 : i32
    %15 = tpu.memref_slice %arg3[%c0_i32_11, %c1792_i32_12] : memref<2x3072xf32, #tpu.memory_space<any>> -> memref<2x1280xf32, #tpu.memory_space<any>>
    %16 = tpu.memref_slice %arg4[%c2_i32_10] : memref<3x!tpu.dma_semaphore, #tpu.memory_space<semaphore_mem>> -> memref<1x!tpu.dma_semaphore, #tpu.memory_space<semaphore_mem>>
    %17 = tpu.memref_squeeze %16 : memref<1x!tpu.dma_semaphore, #tpu.memory_space<semaphore_mem>> -> memref<!tpu.dma_semaphore, #tpu.memory_space<semaphore_mem>>
    tpu.wait_dma2 semaphore(%17 : memref<!tpu.dma_semaphore, #tpu.memory_space<semaphore_mem>>) src(%arg2 : memref<2x1280xf32, #tpu.memory_space<any>>) dst(%15 : memref<2x1280xf32, #tpu.memory_space<any>>)
    return
  }
}

</mosaic_0001>

<llo_original>
// kernel: tpu_custom_call.1
$region0: #{tpu_custom_call.1}
  #allocation0 [shape = 'u32[]', space=smem, size = 0x4, offset = 0x4, fixed_abs, tag = 'smem constant byte address 0x4 - core index']
  #allocation1 [shape = 'u32[144,128]{1,0:T(1,128)}', space=vmem, size = 0x12000, scoped, tag = 'internal scratch']
  #allocation2 [shape = 's32[3]{0}', space=sflag, size = 0xc, scoped, tag = 'scratch operand']
  #allocation3 [shape = 's32[]', space=sflag, size = 0x4, offset = 0, fixed_abs, tag = 'sflag constant byte address 0x0 - dummy sync flag']
  #allocation4 [shape = 'u32[0]{0}', space=smem, size = 0, offset = 0, fixed_abs, tag = 'smem constant byte address 0x0 - null']
  #allocation5 [shape = 's32[]', space=sflag, size = 0x4, offset = 0, fixed_abs, tag = 'sflag constant byte address 0x0 - dummy sync flag']
  #allocation6 [shape = 'u32[0]{0}', space=smem, size = 0, offset = 0, fixed_abs, tag = 'smem constant byte address 0x0 - null']
  #allocation7 [shape = 's32[]', space=sflag, size = 0x4, offset = 0, fixed_abs, tag = 'sflag constant byte address 0x0 - dummy sync flag']
  #allocation8 [shape = 'u32[0]{0}', space=smem, size = 0, offset = 0, fixed_abs, tag = 'smem constant byte address 0x0 - null']
  %s0 = inlined_call_operand.hbm [shape: f32[2,1024], index: 0, kind: input, shape index: {}]
  %s1 = inlined_call_operand.hbm [shape: f32[2,768], index: 1, kind: input, shape index: {}]
  %s2 = inlined_call_operand.hbm [shape: f32[2,1280], index: 2, kind: input, shape index: {}]
  %s3 = inlined_call_operand.hbm [shape: f32[2,3072], index: 3, kind: output, shape index: {}]
  %s4 = sld [smem:[#allocation0]]
  $region2: #{tpu_custom_call.1} parent=0
    _
  %s6 = ssub.s32 1, %s4
  %s7 = scalar_select 0, %s6, %s4
  %s9 = sshll.u32 1, 14
  %s10 = sxor.u32 4294967295, %s9
  %14 = dma.general %s0, 256, %s3, [#allocation2], 131072, [#allocation4], 0, 0
  %s15 = scalar_lea.hbm %s3, 256
  %s16 = scalar_lea.sflag [#allocation2], 1
  %s18 = sshll.u32 1, 14
  %s19 = sxor.u32 4294967295, %s18
  %23 = dma.general %s1, 192, %s15, %s16, 131072, [#allocation6], 0, 0
  %s24 = scalar_lea.hbm %s3, 448
  %s25 = scalar_lea.sflag [#allocation2], 2
  %s27 = sshll.u32 1, 14
  %s28 = sxor.u32 4294967295, %s27
  %32 = dma.general %s2, 320, %s24, %s25, 131072, [#allocation8], 0, 0
  %s33 = smul.u32 2, 1
  %s34 = smul.u32 %s33, 8
  %s35 = sshll.u32 %s34, 4
  %36 = dma.done [#allocation2], %s35
  %s37 = smul.u32 %s33, 6
  %s38 = sshll.u32 %s37, 4
  %39 = dma.done %s16, %s38
  %s40 = smul.u32 %s33, 10
  %s41 = sshll.u32 %s40, 4
  %42 = dma.done %s25, %s41
  %43 = vsyncmov [#allocation2]
  %s44 = vpop.sfrf %43
  %p45 = scmp.eq.s32.totalorder %s44, 0
  %p46 = pneg %p45
  %48 = shalt.err (%p46)
  %s49 = scalar_lea.sflag [#allocation2], 1
  %50 = vsyncmov %s49
  %s51 = vpop.sfrf %50
  %p52 = scmp.eq.s32.totalorder %s51, 0
  %p53 = pneg %p52
  %55 = shalt.err (%p53)
  %s56 = scalar_lea.sflag [#allocation2], 2
  %57 = vsyncmov %s56
  %s58 = vpop.sfrf %57
  %p59 = scmp.eq.s32.totalorder %s58, 0
  %p60 = pneg %p59
  %62 = shalt.err (%p60)

</llo_original>
